<compile_context>
chip_gen: v5e
topology: v5e:2x2
jax: 0.10.0
libtpu: 0.0.40
codegen_flags: <defaults>
</compile_context>

<pallas_src>
import math

import jax
import jax.numpy as jnp
from jax import lax
from jax.experimental import pallas as pl
from jax.experimental.pallas import tpu as pltpu

# Full-precision f32 matmuls everywhere so the Pallas kernels can be validated
# tightly against the XLA reference (the production fast path is bf16 compute).
jax.config.update("jax_default_matmul_precision", "highest")

_NEG_INF = -1e30  # finite "minus infinity" used for padded key positions


# ----------------------------------------------------------------------------
# Small helpers
# ----------------------------------------------------------------------------
def _round_up(x, m):
    return ((x + m - 1) // m) * m


def _seq_pad(t):
    """Pad sequence length: multiples of 128 for real sizes, 8 for tiny ones."""
    return _round_up(t, 128) if t >= 128 else _round_up(t, 8)


def _pick_tile(dim, desired, align):
    """Largest multiple of `align` dividing `dim`, <= desired (dim if small)."""
    if dim <= desired or dim % align != 0:
        return dim
    t = (desired // align) * align
    while t > 0:
        if dim % t == 0:
            return t
        t -= align
    return dim


def _heads_per_block(num_heads, head_dim):
    """Smallest head-group size whose packed width is a multiple of 128 lanes."""
    for d in range(1, num_heads + 1):
        if num_heads % d == 0 and (d * head_dim) % 128 == 0:
            return d
    return num_heads  # packed width == E (full last dim) -> always legal


def _tpu_vmem_capacity():
    try:
        info = pltpu.get_tpu_info()
        cap = getattr(info, "vmem_capacity_bytes", None)
        if cap:
            return int(cap)
    except Exception:
        pass
    return 64 * 1024 * 1024  # conservative (v7x per-core VMEM)


_VMEM_CAP = _tpu_vmem_capacity()
_VMEM_LIMIT = min(int(_VMEM_CAP * 0.6), 96 * 1024 * 1024)
if _VMEM_CAP >= 100 * 1024 * 1024:       # v5e / v6e: 128 MiB per core
    _TQ_HINT, _TK_HINT, _TM_HINT = 512, 1024, 1024
else:                                     # v7x: 64 MiB per core
    _TQ_HINT, _TK_HINT, _TM_HINT = 256, 512, 512


# ----------------------------------------------------------------------------
# Kernel 1: dense projection  y = x @ W + b
# ----------------------------------------------------------------------------
def _linear_kernel_single(x_ref, w_ref, b_ref, o_ref):
    o_ref[...] = (jnp.dot(x_ref[...], w_ref[...],
                          preferred_element_type=jnp.float32)
                  + b_ref[...]).astype(o_ref.dtype)


def _linear_kernel_reduce(x_ref, w_ref, b_ref, o_ref, acc_ref):
    k = pl.program_id(2)

    @pl.when(k == 0)
    def _():
        acc_ref[...] = jnp.zeros_like(acc_ref)

    acc_ref[...] += jnp.dot(x_ref[...], w_ref[...],
                            preferred_element_type=jnp.float32)

    @pl.when(k == pl.num_programs(2) - 1)
    def _():
        o_ref[...] = (acc_ref[...] + b_ref[...]).astype(o_ref.dtype)


def pallas_linear(x2d, w, b, *, compute_dtype=None, out_dtype=None):
    """x2d: (M, K), w: (K, N), b: (N,) -> (M, N)."""
    M, K = x2d.shape
    N = w.shape[1]
    out_dtype = out_dtype or x2d.dtype
    if compute_dtype is not None:
        x2d = x2d.astype(compute_dtype)
        w = w.astype(compute_dtype)

    M_pad = _round_up(M, 8)
    if M_pad != M:
        x2d = jnp.pad(x2d, ((0, M_pad - M), (0, 0)))

    tm = _pick_tile(M_pad, _TM_HINT, 8)
    tn = _pick_tile(N, 256, 128)
    # Take the whole reduction axis when it fits (E=1280 for Qwen2-Audio):
    # removes the K grid axis and the f32 accumulator scratch entirely.
    tk = K if (K <= 2048 or K % 128 != 0) else _pick_tile(K, 1024, 128)

    nm, nn, nk = M_pad // tm, N // tn, K // tk
    item = jnp.dtype(x2d.dtype).itemsize
    cost = pl.CostEstimate(
        flops=2 * M_pad * N * K,
        transcendentals=0,
        bytes_accessed=int(nn * M_pad * K * item + nm * K * N * item
                           + M_pad * N * jnp.dtype(out_dtype).itemsize + N * 4))

    bias = b.astype(jnp.float32).reshape(1, N)

    if nk == 1:
        out = pl.pallas_call(
            _linear_kernel_single,
            out_shape=jax.ShapeDtypeStruct((M_pad, N), out_dtype),
            grid=(nm, nn),
            in_specs=[
                pl.BlockSpec((tm, K), lambda i, j: (i, 0)),
                pl.BlockSpec((K, tn), lambda i, j: (0, j)),
                pl.BlockSpec((1, tn), lambda i, j: (0, j)),
            ],
            out_specs=pl.BlockSpec((tm, tn), lambda i, j: (i, j)),
            compiler_params=pltpu.CompilerParams(
                dimension_semantics=("parallel", "parallel"),
                vmem_limit_bytes=_VMEM_LIMIT),
            cost_estimate=cost,
        )(x2d, w, bias)
    else:
        out = pl.pallas_call(
            _linear_kernel_reduce,
            out_shape=jax.ShapeDtypeStruct((M_pad, N), out_dtype),
            grid=(nm, nn, nk),
            in_specs=[
                pl.BlockSpec((tm, tk), lambda i, j, k: (i, k)),
                pl.BlockSpec((tk, tn), lambda i, j, k: (k, j)),
                pl.BlockSpec((1, tn), lambda i, j, k: (0, j)),
            ],
            out_specs=pl.BlockSpec((tm, tn), lambda i, j, k: (i, j)),
            scratch_shapes=[pltpu.VMEM((tm, tn), jnp.float32)],
            compiler_params=pltpu.CompilerParams(
                dimension_semantics=("parallel", "parallel", "arbitrary"),
                vmem_limit_bytes=_VMEM_LIMIT),
            cost_estimate=cost,
        )(x2d, w, bias)

    return out[:M] if M_pad != M else out


# ----------------------------------------------------------------------------
# Kernel 2: flash-style attention over head groups, (B, T, E) layout in & out.
#   grid = (B, H/hp, T/tq, S/tk); online softmax; m/l/acc scratch in VMEM.
#   q is pre-scaled (scaling folded into q_proj at parameter-prep time).
# ----------------------------------------------------------------------------
def _make_flash_kernel(hp, dh, mask_mode):
    def kernel(*refs):
        if mask_mode == "none":
            q_ref, k_ref, v_ref, o_ref, m_sc, l_sc, acc_sc = refs
            mask_ref = None
        else:
            q_ref, k_ref, v_ref, mask_ref, o_ref, m_sc, l_sc, acc_sc = refs

        ki = pl.program_id(3)

        @pl.when(ki == 0)
        def _():
            m_sc[...] = jnp.full_like(m_sc, -jnp.inf)
            l_sc[...] = jnp.zeros_like(l_sc)
            acc_sc[...] = jnp.zeros_like(acc_sc)

        q = q_ref[0]                                   # (tq, hp*dh)
        k = k_ref[0]                                   # (tk, hp*dh)
        v = v_ref[0]                                   # (tk, hp*dh)
        if mask_mode == "key":
            bias = mask_ref[0].astype(jnp.float32)     # (1, tk)
        elif mask_mode == "full":
            bias = mask_ref[0, 0].astype(jnp.float32)  # (tq, tk)
        else:
            bias = None

        for h in range(hp):                            # unrolled at trace time
            qh = q[:, h * dh:(h + 1) * dh]
            kh = k[:, h * dh:(h + 1) * dh]
            vh = v[:, h * dh:(h + 1) * dh]
            # contract head dims of q and k directly (no in-kernel transpose)
            s = lax.dot_general(qh, kh, (((1,), (1,)), ((), ())),
                                preferred_element_type=jnp.float32)
            if bias is not None:
                s = s + bias
            m_prev = m_sc[h]
            m_new = jnp.maximum(m_prev, jnp.max(s, axis=-1, keepdims=True))
            alpha = jnp.exp(m_prev - m_new)
            p = jnp.exp(s - m_new)
            l_sc[h] = alpha * l_sc[h] + jnp.sum(p, axis=-1, keepdims=True)
            acc_sc[h] = alpha * acc_sc[h] + lax.dot_general(
                p.astype(vh.dtype), vh, (((1,), (0,)), ((), ())),
                preferred_element_type=jnp.float32)
            m_sc[h] = m_new

        @pl.when(ki == pl.num_programs(3) - 1)
        def _():
            outs = [(acc_sc[h] / l_sc[h]).astype(o_ref.dtype)
                    for h in range(hp)]
            o_ref[0] = outs[0] if hp == 1 else jnp.concatenate(outs, axis=-1)

    return kernel


# ----------------------------------------------------------------------------
# Kernel 3: eager attention that also materializes the softmax weights
#   (only used when output_attentions=True).  Full key length per step.
# ----------------------------------------------------------------------------
def _make_eager_kernel(hp, dh, mask_mode):
    def kernel(*refs):
        if mask_mode == "none":
            q_ref, k_ref, v_ref, o_ref, w_ref = refs
            mask_ref = None
        else:
            q_ref, k_ref, v_ref, mask_ref, o_ref, w_ref = refs

        q = q_ref[0]
        k = k_ref[0]
        v = v_ref[0]
        if mask_mode == "key":
            bias = mask_ref[0].astype(jnp.float32)
        elif mask_mode == "full":
            bias = mask_ref[0, 0].astype(jnp.float32)
        else:
            bias = None

        outs = []
        for h in range(hp):
            qh = q[:, h * dh:(h + 1) * dh]
            kh = k[:, h * dh:(h + 1) * dh]
            vh = v[:, h * dh:(h + 1) * dh]
            s = lax.dot_general(qh, kh, (((1,), (1,)), ((), ())),
                                preferred_element_type=jnp.float32)
            if bias is not None:
                s = s + bias
            s = s - jnp.max(s, axis=-1, keepdims=True)
            e = jnp.exp(s)
            # exact division: returned weights must sum to 1 (HF semantics)
            p = e / jnp.sum(e, axis=-1, keepdims=True)
            w_ref[0, h] = p.astype(w_ref.dtype)
            outs.append(lax.dot_general(
                p.astype(vh.dtype), vh, (((1,), (0,)), ((), ())),
                preferred_element_type=jnp.float32).astype(o_ref.dtype))
        o_ref[0] = outs[0] if hp == 1 else jnp.concatenate(outs, axis=-1)

    return kernel


def pallas_attention(qkv3, num_heads, head_dim, mask_mode, mask_arr, *,
                     out_dtype, with_weights=False):
    """qkv3: fused projections (B, T_pad, 3E) in (T, H*Dh) column layout.
    Returns ((B, T_pad, E) attn output, optional (B, H, T_pad, S_pad) weights)."""
    B, T_pad, three_e = qkv3.shape
    E = three_e // 3
    S_pad = T_pad
    hp = _heads_per_block(num_heads, head_dim)
    hd = hp * head_dim
    n_groups = num_heads // hp

    tq = _pick_tile(T_pad, _TQ_HINT, 128)
    tk = S_pad if with_weights else _pick_tile(S_pad, _TK_HINT, 128)
    n_qb = T_pad // tq
    n_kb = S_pad // tk

    if hd % 128 == 0:
        # Read q/k/v straight from the fused projection slab (no XLA slices).
        hg = E // hd
        q_in = k_in = v_in = qkv3
        k_off, v_off = hg, 2 * hg
    else:
        q_in = qkv3[:, :, :E]
        k_in = qkv3[:, :, E:2 * E]
        v_in = qkv3[:, :, 2 * E:]
        k_off = v_off = 0

    q_spec = pl.BlockSpec((1, tq, hd), lambda b, g, qi, ki: (b, qi, g))
    k_spec = pl.BlockSpec((1, tk, hd), lambda b, g, qi, ki: (b, ki, k_off + g))
    v_spec = pl.BlockSpec((1, tk, hd), lambda b, g, qi, ki: (b, ki, v_off + g))
    o_spec = pl.BlockSpec((1, tq, hd), lambda b, g, qi, ki: (b, qi, g))

    in_specs = [q_spec, k_spec, v_spec]
    inputs = [q_in, k_in, v_in]
    if mask_mode == "key":
        in_specs.append(pl.BlockSpec((1, 1, tk),
                                     lambda b, g, qi, ki: (b, 0, ki)))
        inputs.append(mask_arr)
    elif mask_mode == "full":
        in_specs.append(pl.BlockSpec((1, 1, tq, tk),
                                     lambda b, g, qi, ki: (b, 0, qi, ki)))
        inputs.append(mask_arr)

    grid = (B, n_groups, n_qb, n_kb)
    cparams = pltpu.CompilerParams(
        dimension_semantics=("parallel", "parallel", "parallel", "arbitrary"),
        vmem_limit_bytes=_VMEM_LIMIT)

    item = jnp.dtype(qkv3.dtype).itemsize
    if mask_mode == "key":
        mask_bytes = B * n_groups * n_qb * S_pad * mask_arr.dtype.itemsize
    elif mask_mode == "full":
        mask_bytes = B * n_groups * T_pad * S_pad * mask_arr.dtype.itemsize
    else:
        mask_bytes = 0
    cost = pl.CostEstimate(
        flops=4 * B * num_heads * T_pad * S_pad * head_dim,
        transcendentals=B * num_heads * T_pad * S_pad,
        bytes_accessed=int(B * n_groups * T_pad * hd * item
                           + 2 * B * n_groups * n_qb * S_pad * hd * item
                           + B * T_pad * E * jnp.dtype(out_dtype).itemsize
                           + mask_bytes))

    if with_weights:
        kernel = _make_eager_kernel(hp, head_dim, mask_mode)
        w_spec = pl.BlockSpec((1, hp, tq, S_pad),
                              lambda b, g, qi, ki: (b, g, qi, 0))
        out, weights = pl.pallas_call(
            kernel,
            out_shape=(jax.ShapeDtypeStruct((B, T_pad, E), out_dtype),
                       jax.ShapeDtypeStruct((B, num_heads, T_pad, S_pad),
                                            jnp.float32)),
            grid=grid,
            in_specs=in_specs,
            out_specs=(o_spec, w_spec),
            compiler_params=cparams,
            cost_estimate=cost,
        )(*inputs)
        return out, weights

    kernel = _make_flash_kernel(hp, head_dim, mask_mode)
    out = pl.pallas_call(
        kernel,
        out_shape=jax.ShapeDtypeStruct((B, T_pad, E), out_dtype),
        grid=grid,
        in_specs=in_specs,
        out_specs=o_spec,
        scratch_shapes=[pltpu.VMEM((hp, tq, 1), jnp.float32),   # running max
                        pltpu.VMEM((hp, tq, 1), jnp.float32),   # running sum
                        pltpu.VMEM((hp, tq, head_dim), jnp.float32)],
        compiler_params=cparams,
        cost_estimate=cost,
    )(*inputs)
    return out, None


# ----------------------------------------------------------------------------
# Mask preparation (handles key-padding masks and full 4-D additive masks,
# plus the extra masking needed for padded key positions).
# ----------------------------------------------------------------------------
def _prepare_mask(attention_mask, B, T, T_pad, S, S_pad):
    if attention_mask is None:
        if S_pad == S:
            return "none", None
        kmask = jnp.where(jnp.arange(S_pad) < S, 0.0, _NEG_INF)
        kmask = kmask.astype(jnp.float32)
        return "key", jnp.broadcast_to(kmask[None, None, :], (B, 1, S_pad))
    m = attention_mask.astype(jnp.float32)[:, :, :, :S]
    if m.shape[2] == 1:
        m = m[:, :, 0, :]                                     # (B, 1, S)
        if S_pad != S:
            m = jnp.pad(m, ((0, 0), (0, 0), (0, S_pad - S)),
                        constant_values=_NEG_INF)
        return "key", m
    if S_pad != S:
        m = jnp.pad(m, ((0, 0), (0, 0), (0, 0), (0, S_pad - S)),
                    constant_values=_NEG_INF)
    if T_pad != T:
        m = jnp.pad(m, ((0, 0), (0, 0), (0, T_pad - T), (0, 0)))
    # Additive masks are 0 / very-negative: bf16 halves their DMA volume.
    return "full", m.astype(jnp.bfloat16)


# ----------------------------------------------------------------------------
# Module wrapper (matches Qwen2AudioAttention.forward, eager impl,
# dropout=0.0, layer_head_mask=None).
# ----------------------------------------------------------------------------
def prepare_qwen2_audio_attention_params(params, num_heads, param_dtype=None):
    """One-time (load-time) prep: fuse q/k/v into a single (E, 3E) projection
    with the 1/sqrt(head_dim) scaling folded into the q columns."""
    E = params["q_w"].shape[0]
    head_dim = E // num_heads
    scaling = head_dim ** -0.5
    w_qkv = jnp.concatenate(
        [params["q_w"] * scaling, params["k_w"], params["v_w"]], axis=1)
    b_qkv = jnp.concatenate(
        [params["q_b"] * scaling,
         jnp.zeros((E,), params["q_b"].dtype),  # k_proj has no bias
         params["v_b"]], axis=0)
    w_out, b_out = params["o_w"], params["o_b"]
    if param_dtype is not None:
        w_qkv = w_qkv.astype(param_dtype)
        w_out = w_out.astype(param_dtype)
    return {"w_qkv": w_qkv, "b_qkv": b_qkv.astype(jnp.float32),
            "w_out": w_out, "b_out": b_out.astype(jnp.float32),
            "num_heads": num_heads, "head_dim": head_dim, "embed_dim": E}


def qwen2_audio_attention_forward(hidden_states, prepared, attention_mask=None,
                                  output_attentions=False, compute_dtype=None):
    """Returns (attn_output, attn_weights or None, None)."""
    # TODO(synk): dropout (training mode) and layer_head_mask are not implemented.
    B, T, E = hidden_states.shape
    num_heads = prepared["num_heads"]
    head_dim = prepared["head_dim"]
    in_dtype = hidden_states.dtype
    act_dtype = compute_dtype if compute_dtype is not None else in_dtype

    if attention_mask is not None and attention_mask.ndim != 4:
        attention_mask = None  # module only applies 4-D masks

    S = T
    T_pad = _seq_pad(T)
    S_pad = T_pad

    x = hidden_states
    if T_pad != T:
        x = jnp.pad(x, ((0, 0), (0, T_pad - T), (0, 0)))
    x2d = x.reshape(B * T_pad, E)

    # Fused QKV projection (scaling already folded in at prep time); when
    # compute_dtype=bf16 the projection output is written in bf16 directly.
    qkv = pallas_linear(x2d, prepared["w_qkv"], prepared["b_qkv"],
                        compute_dtype=compute_dtype, out_dtype=act_dtype)
    qkv3 = qkv.reshape(B, T_pad, 3 * E)

    mask_mode, mask_arr = _prepare_mask(attention_mask, B, T, T_pad, S, S_pad)

    attn3, weights = pallas_attention(
        qkv3, num_heads, head_dim, mask_mode, mask_arr,
        out_dtype=act_dtype, with_weights=output_attentions)

    out = pallas_linear(attn3.reshape(B * T_pad, E),
                        prepared["w_out"], prepared["b_out"],
                        compute_dtype=compute_dtype, out_dtype=in_dtype)
    out = out.reshape(B, T_pad, E)[:, :T, :]

    attn_weights = None
    if output_attentions:
        attn_weights = weights[:, :, :T, :S]
    return out, attn_weights, None


# ----------------------------------------------------------------------------
# Pure-JAX reference for validation.
# ----------------------------------------------------------------------------
def reference_forward(hidden_states, params, num_heads, attention_mask=None):
    B, T, E = hidden_states.shape
    head_dim = E // num_heads
    scaling = head_dim ** -0.5
    q = (hidden_states @ params["q_w"] + params["q_b"]) * scaling
    k = hidden_states @ params["k_w"]
    v = hidden_states @ params["v_w"] + params["v_b"]

    def sh(t):
        return t.reshape(B, T, num_heads, head_dim).transpose(0, 2, 1, 3)

    qh, kh, vh = sh(q), sh(k), sh(v)
    s = jnp.einsum("bhtd,bhsd->bhts", qh, kh)
    if attention_mask is not None:
        s = s + attention_mask[:, :, :, :T]
    p = jax.nn.softmax(s, axis=-1)
    o = jnp.einsum("bhts,bhsd->bhtd", p, vh)
    o = o.transpose(0, 2, 1, 3).reshape(B, T, E)
    return o @ params["o_w"] + params["o_b"], p


if __name__ == "__main__":
    B, T, E, H = 2, 8, 32, 4

    key = jax.random.PRNGKey(0)
    ks = jax.random.split(key, 10)
    wscale = 1.0 / math.sqrt(E)
    params = {
        # weights stored already transposed: (in_features, out_features)
        "q_w": jax.random.normal(ks[0], (E, E), jnp.float32) * wscale,
        "q_b": jax.random.normal(ks[1], (E,), jnp.float32) * 0.1,
        "k_w": jax.random.normal(ks[2], (E, E), jnp.float32) * wscale,  # no bias
        "v_w": jax.random.normal(ks[3], (E, E), jnp.float32) * wscale,
        "v_b": jax.random.normal(ks[4], (E,), jnp.float32) * 0.1,
        "o_w": jax.random.normal(ks[5], (E, E), jnp.float32) * wscale,
        "o_b": jax.random.normal(ks[6], (E,), jnp.float32) * 0.1,
    }
    prepared = prepare_qwen2_audio_attention_params(params, H)

    hidden = jax.random.normal(ks[7], (B, T, E), jnp.float32)
    key_bias = jnp.where(jax.random.uniform(ks[8], (B, 1, 1, T)) > 0.8,
                         -1e9, 0.0).astype(jnp.float32)
    full_mask = jnp.broadcast_to(key_bias, (B, 1, T, T))

    tol = dict(atol=5e-3, rtol=5e-3)

    # 1) flash path, full (B,1,T,T) additive mask
    out1, _, _ = qwen2_audio_attention_forward(hidden, prepared, full_mask)
    out1 = jax.block_until_ready(out1)
    ref1, refw1 = reference_forward(hidden, params, H, full_mask)
    assert jnp.allclose(out1, ref1, **tol), "flash (full mask) mismatch"

    # 2) eager path with materialized attention weights
    out2, w2, _ = qwen2_audio_attention_forward(hidden, prepared, full_mask,
                                                output_attentions=True)
    out2, w2 = jax.block_until_ready((out2, w2))
    assert jnp.allclose(out2, ref1, **tol), "eager output mismatch"
    assert jnp.allclose(w2, refw1, **tol), "attention weights mismatch"

    # 3) flash path, no mask
    out3, _, _ = qwen2_audio_attention_forward(hidden, prepared, None)
    out3 = jax.block_until_ready(out3)
    ref3, _ = reference_forward(hidden, params, H, None)
    assert jnp.allclose(out3, ref3, **tol), "flash (no mask) mismatch"

    # 4) key-padding mask (B,1,1,T) + sequence length that needs padding
    T2 = 12
    hidden2 = jax.random.normal(ks[9], (B, T2, E), jnp.float32)
    key_mask2 = jnp.where(
        jax.random.uniform(jax.random.fold_in(key, 42), (B, 1, 1, T2)) > 0.7,
        -1e9, 0.0).astype(jnp.float32)
    out4, _, _ = qwen2_audio_attention_forward(hidden2, prepared, key_mask2)
    out4 = jax.block_until_ready(out4)
    ref4, _ = reference_forward(hidden2, params, H, key_mask2)
    assert jnp.allclose(out4, ref4, **tol), "flash (key mask + padding) mismatch"

    # 5) bf16 end-to-end compute path (bf16 weights/activations, f32 output)
    prepared_bf16 = prepare_qwen2_audio_attention_params(
        params, H, param_dtype=jnp.bfloat16)
    out5, _, _ = qwen2_audio_attention_forward(hidden, prepared_bf16, full_mask,
                                               compute_dtype=jnp.bfloat16)
    out5 = jax.block_until_ready(out5)
    assert bool(jnp.all(jnp.isfinite(out5))), "bf16 output not finite"
    assert jnp.allclose(out5, ref1, atol=1e-1, rtol=1e-1), "bf16 output mismatch"

    print("KERNEL_OK")
</pallas_src>

<mosaic_0001>
module attributes {stable_mosaic.version = 11 : i64} {
  func.func @_linear_kernel_single(%arg0: i32, %arg1: i32, %arg2: memref<16x32xf32, #tpu.memory_space<vmem>>, %arg3: memref<32x96xf32, #tpu.memory_space<vmem>>, %arg4: memref<1x96xf32, #tpu.memory_space<vmem>>, %arg5: memref<16x96xf32, #tpu.memory_space<vmem>>) attributes {dimension_semantics = [#tpu.dimension_semantics<parallel>, #tpu.dimension_semantics<parallel>], iteration_bounds = array<i64: 1, 1>, scalar_prefetch = 0 : i64, scratch_operands = 0 : i64, tpu.core_type = #tpu.core_type<tc>, window_params = [{transform_indices = @transform_0, window_bounds = array<i64: 16, 32>}, {transform_indices = @transform_1, window_bounds = array<i64: 32, 96>}, {transform_indices = @transform_2, window_bounds = array<i64: 1, 96>}, {transform_indices = @transform_3, window_bounds = array<i64: 16, 96>}]} {
    %c0 = arith.constant 0 : index
    %c0_0 = arith.constant 0 : index
    %0 = vector.load %arg2[%c0, %c0_0] : memref<16x32xf32, #tpu.memory_space<vmem>>, vector<16x32xf32>
    %c0_1 = arith.constant 0 : index
    %c0_2 = arith.constant 0 : index
    %1 = vector.load %arg3[%c0_1, %c0_2] : memref<32x96xf32, #tpu.memory_space<vmem>>, vector<32x96xf32>
    %cst = arith.constant dense<0.000000e+00> : vector<16x96xf32>
    %2 = tpu.matmul %0, %1, %cst {dimension_numbers = #tpu.dot_dimension_numbers<[1], [0], [0], [1], [0, 0, 1, 1], [], []>, precision = #tpu.contract_precision<fp32>} : vector<16x32xf32>, vector<32x96xf32>, vector<16x96xf32> -> vector<16x96xf32>
    %c0_3 = arith.constant 0 : index
    %c0_4 = arith.constant 0 : index
    %3 = vector.load %arg4[%c0_3, %c0_4] : memref<1x96xf32, #tpu.memory_space<vmem>>, vector<1x96xf32>
    %4 = vector.broadcast %3 : vector<1x96xf32> to vector<16x96xf32>
    %5 = arith.addf %2, %4 : vector<16x96xf32>
    %c0_5 = arith.constant 0 : index
    %c0_6 = arith.constant 0 : index
    %6 = vector.load %arg5[%c0_5, %c0_6] : memref<16x96xf32, #tpu.memory_space<vmem>>, vector<16x96xf32>
    tpu.vector_store %arg5[%c0_5, %c0_6], %5 {strides = array<i32>} : memref<16x96xf32, #tpu.memory_space<vmem>>, vector<16x96xf32>,
    return
  }
  func.func @transform_0(%arg0: i32, %arg1: i32) -> (i32, i32) {
    %c0_i32 = arith.constant 0 : i32
    %c0_i32_0 = arith.constant 0 : i32
    return %arg0, %c0_i32 : i32, i32
  }
  func.func @transform_1(%arg0: i32, %arg1: i32) -> (i32, i32) {
    %c0_i32 = arith.constant 0 : i32
    %c0_i32_0 = arith.constant 0 : i32
    return %c0_i32, %arg1 : i32, i32
  }
  func.func @transform_2(%arg0: i32, %arg1: i32) -> (i32, i32) {
    %c0_i32 = arith.constant 0 : i32
    %c0_i32_0 = arith.constant 0 : i32
    return %c0_i32, %arg1 : i32, i32
  }
  func.func @transform_3(%arg0: i32, %arg1: i32) -> (i32, i32) {
    %c0_i32 = arith.constant 0 : i32
    return %arg0, %arg1 : i32, i32
  }
}

</mosaic_0001>

<llo_original>
// kernel: tpu_custom_call.1
$region0: #{tpu_custom_call.1}
  #allocation0 [shape = 'u32[]', space=smem, size = 0x4, offset = 0x4, fixed_abs, tag = 'smem constant byte address 0x4 - core index']
  #allocation1 [shape = 'u32[72,128]{1,0:T(1,128)}', space=vmem, size = 0x9000, scoped, tag = 'internal scratch']
  %s0 = inlined_call_operand.hbm [shape: f32[16,32], index: 0, kind: input, shape index: {}]
  %s1 = inlined_call_operand.hbm [shape: f32[32,96], index: 1, kind: input, shape index: {}]
  %s2 = inlined_call_operand.vmem [shape: f32[1,96], index: 2, kind: input, shape index: {}]
  %s3 = inlined_call_operand.hbm [shape: f32[16,96], index: 3, kind: output, shape index: {}]
  %s4 = sld [smem:[#allocation0]]
  $region30: #{tpu_custom_call.1} parent=0
    _
  %s6 = ssub.s32 1, %s4
  %s7 = scalar_select 0, %s6, %s4
  $region1: #{tpu_custom_call.1} parent=0
    #allocation2 [shape = 'u8[8192]{0}', space=vmem, size = 0x2000, scoped, tag = 'input window, operand 0, single buffered']
    #allocation3 [shape = 's32[1]{0}', space=sflag, size = 0x4, scoped, tag = 'scoped memory for tpu_custom_call.1']
    #allocation4 [shape = 's32[1]{0}', space=sflag, size = 0x4, scoped, tag = 'scoped memory for tpu_custom_call.1']
    #allocation5 [shape = 'u8[16384]{0}', space=vmem, size = 0x4000, scoped, tag = 'input window, operand 1, single buffered']
    #allocation6 [shape = 's32[1]{0}', space=sflag, size = 0x4, scoped, tag = 'scoped memory for tpu_custom_call.1']
    #allocation7 [shape = 'u8[8192]{0}', space=vmem, size = 0x2000, scoped, tag = 'output window, operand 0, single buffered']
    %8 = vsyncpa [#allocation3], 0
    %9 = vsyncpa [#allocation6], 0
    %10 = vsyncpa [#allocation4], 0
    // Predicated region
    $region2: #{tpu_custom_call.1} parent=1 // pred_check
      _
    $region3: #{tpu_custom_call.1} parent=1 // pred_check_branch
      %12 = sbr.rel (0) target = $region5
    $region4: #{tpu_custom_call.1} parent=1 // pred_region
      %14 = vsyncadd [#allocation3], 0
      %s15 = sshll.u32 %s0, 4
      %s16 = int_to_ptr.hbm [resolvable:$true] %s15
      %s17 = sshll.u32 [#allocation2], 4
      %s18 = int_to_ptr.vmem [resolvable:$true] %s17
      %23 = dma.hbm_to_vmem [thread:$0]  %s16, 256, %s18, [#allocation3], 128, 128, 8
    $region5: #{tpu_custom_call.1} parent=1 // pred_fallthru
      _
    // Predicated region
    $region6: #{tpu_custom_call.1} parent=1 // pred_check
      _
    $region7: #{tpu_custom_call.1} parent=1 // pred_check_branch
      %25 = sbr.rel (0) target = $region9
    $region8: #{tpu_custom_call.1} parent=1 // pred_region
      %27 = vsyncadd [#allocation6], 0
      %s28 = sshll.u32 %s1, 4
      %s29 = int_to_ptr.hbm [resolvable:$true] %s28
      %s30 = sshll.u32 [#allocation5], 4
      %s31 = int_to_ptr.vmem [resolvable:$true] %s30
      %36 = dma.hbm_to_vmem [thread:$0]  %s29, 512, %s31, [#allocation6], 128, 128, 8
    $region9: #{tpu_custom_call.1} parent=1 // pred_fallthru
      _
    // Predicated region
    $region10: #{tpu_custom_call.1} parent=1 // pred_check
      _
    $region11: #{tpu_custom_call.1} parent=1 // pred_check_branch
      %38 = sbr.rel (0) target = $region13
    $region12: #{tpu_custom_call.1} parent=1 // pred_region
      _
    $region13: #{tpu_custom_call.1} parent=1 // pred_fallthru
      _
    // Predicated region
    $region14: #{tpu_custom_call.1} parent=1 // pred_check
      _
    $region15: #{tpu_custom_call.1} parent=1 // pred_check_branch
      %40 = sbr.rel (0) target = $region17
    $region16: #{tpu_custom_call.1} parent=1 // pred_region
      %42 = dma.done [#allocation3], 256
    $region17: #{tpu_custom_call.1} parent=1 // pred_fallthru
      _
    // Predicated region
    $region18: #{tpu_custom_call.1} parent=1 // pred_check
      _
    $region19: #{tpu_custom_call.1} parent=1 // pred_check_branch
      %44 = sbr.rel (0) target = $region21
    $region20: #{tpu_custom_call.1} parent=1 // pred_region
      %46 = dma.done [#allocation6], 512
    $region21: #{tpu_custom_call.1} parent=1 // pred_fallthru
      _
    %v47 = vld [vmem:[#allocation2] sm:$0xff]
    %v48 = vld [vmem:[#allocation2 + $0x8] sm:$0xff]
    %v49 = vld [vmem:[#allocation5] sm:$0xff]
    %v50 = vld [vmem:[#allocation5 + $0x8] sm:$0xff]
    %v51 = vld [vmem:[#allocation5 + $0x10] sm:$0xff]
    %v52 = vld [vmem:[#allocation5 + $0x18] sm:$0xff]
    %v53 = vld [vmem:[%s2] sm:$0x1]
    %v55 = vperm.slane %v53, 0
    %vm57 = vcmask 261120
    %v59 = vsel %vm57, %v47, 0
    %v62 = vsel %vm57, %v48, 0
    %64 = vmatpush.msra.mxu0 0.0
    %65 = vmatpush.msra.mxu0 0.0
    %66 = vmatpush.msra.mxu0 0.0
    %67 = vmatpush.msra.mxu0 0.0
    %68 = vmatpush.msra.mxu0 0.0
    %69 = vmatpush.msra.mxu0 0.0
    %70 = vmatpush.msra.mxu0 0.0
    %71 = vmatpush.msra.mxu0 0.0
    %72 = vmatpush.msra.mxu0 0.0
    %73 = vmatpush.msra.mxu0 0.0
    %74 = vmatpush.msra.mxu0 0.0
    %75 = vmatpush.msra.mxu0 0.0
    %v76 = vand.u32 %v52, 4294901760
    %77 = vmatpush.msra.mxu0 %v76
    %v78 = vand.u32 %v51, 4294901760
    %79 = vmatpush.msra.mxu0 %v78
    %v80 = vand.u32 %v50, 4294901760
    %81 = vmatpush.msra.mxu0 %v80
    %v82 = vand.u32 %v49, 4294901760
    %83 = vmatpush.msra.mxu0 %v82
    %v84 = vand.u32 %v59, 4294901760
    %v85 = vsub.f32 %v59, %v84
    %v86 = vand.u32 %v85, 4294901760
    %v87 = vsub.f32 %v85, %v86
    %v88 = vand.u32 %v87, 4294901760
    %89 = vmatmul.f32.gmra.mxu0 %v88
    %v90 = vpop.f32.mrf.mxu0
    %v91 = vadd.f32 %v55, %v90
    %v92 = vand.u32 %v62, 4294901760
    %v93 = vsub.f32 %v62, %v92
    %v94 = vand.u32 %v93, 4294901760
    %v95 = vsub.f32 %v93, %v94
    %v96 = vand.u32 %v95, 4294901760
    %97 = vmatmul.f32.gmra.mxu0 %v96
    %v98 = vpop.f32.mrf.mxu0
    %v99 = vadd.f32 %v55, %v98
    %100 = vdwg.mxu0
    %101 = vmatpush.msra.mxu0 0.0
    %102 = vmatpush.msra.mxu0 0.0
    %103 = vmatpush.msra.mxu0 0.0
    %104 = vmatpush.msra.mxu0 0.0
    %105 = vmatpush.msra.mxu0 0.0
    %106 = vmatpush.msra.mxu0 0.0
    %107 = vmatpush.msra.mxu0 0.0
    %108 = vmatpush.msra.mxu0 0.0
    %109 = vmatpush.msra.mxu0 0.0
    %110 = vmatpush.msra.mxu0 0.0
    %111 = vmatpush.msra.mxu0 0.0
    %112 = vmatpush.msra.mxu0 0.0
    %v113 = vand.u32 %v52, 4294901760
    %v114 = vsub.f32 %v52, %v113
    %v115 = vand.u32 %v114, 4294901760
    %v116 = vsub.f32 %v114, %v115
    %v117 = vand.u32 %v116, 4294901760
    %118 = vmatpush.msra.mxu0 %v117
    %v119 = vand.u32 %v51, 4294901760
    %v120 = vsub.f32 %v51, %v119
    %v121 = vand.u32 %v120, 4294901760
    %v122 = vsub.f32 %v120, %v121
    %v123 = vand.u32 %v122, 4294901760
    %124 = vmatpush.msra.mxu0 %v123
    %v125 = vand.u32 %v50, 4294901760
    %v126 = vsub.f32 %v50, %v125
    %v127 = vand.u32 %v126, 4294901760
    %v128 = vsub.f32 %v126, %v127
    %v129 = vand.u32 %v128, 4294901760
    %130 = vmatpush.msra.mxu0 %v129
    %v131 = vand.u32 %v49, 4294901760
    %v132 = vsub.f32 %v49, %v131
    %v133 = vand.u32 %v132, 4294901760
    %v134 = vsub.f32 %v132, %v133
    %v135 = vand.u32 %v134, 4294901760
    %136 = vmatpush.msra.mxu0 %v135
    %v137 = vand.u32 %v59, 4294901760
    %138 = vmatmul.f32.gmra.mxu0 %v137
    %v139 = vpop.f32.mrf.mxu0
    %v140 = vadd.f32 %v91, %v139
    %v141 = vand.u32 %v62, 4294901760
    %142 = vmatmul.f32.gmra.mxu0 %v141
    %v143 = vpop.f32.mrf.mxu0
    %v144 = vadd.f32 %v99, %v143
    %145 = vdwg.mxu0
    %146 = vmatpush.msra.mxu0 0.0
    %147 = vmatpush.msra.mxu0 0.0
    %148 = vmatpush.msra.mxu0 0.0
    %149 = vmatpush.msra.mxu0 0.0
    %150 = vmatpush.msra.mxu0 0.0
    %151 = vmatpush.msra.mxu0 0.0
    %152 = vmatpush.msra.mxu0 0.0
    %153 = vmatpush.msra.mxu0 0.0
    %154 = vmatpush.msra.mxu0 0.0
    %155 = vmatpush.msra.mxu0 0.0
    %156 = vmatpush.msra.mxu0 0.0
    %157 = vmatpush.msra.mxu0 0.0
    %v158 = vand.u32 %v52, 4294901760
    %v159 = vsub.f32 %v52, %v158
    %160 = vmatpush.msra.mxu0 %v159
    %v161 = vand.u32 %v51, 4294901760
    %v162 = vsub.f32 %v51, %v161
    %163 = vmatpush.msra.mxu0 %v162
    %v164 = vand.u32 %v50, 4294901760
    %v165 = vsub.f32 %v50, %v164
    %166 = vmatpush.msra.mxu0 %v165
    %v167 = vand.u32 %v49, 4294901760
    %v168 = vsub.f32 %v49, %v167
    %169 = vmatpush.msra.mxu0 %v168
    %v170 = vand.u32 %v59, 4294901760
    %v171 = vsub.f32 %v59, %v170
    %172 = vmatmul.f32.gmra.mxu0 %v171
    %v173 = vpop.f32.mrf.mxu0
    %v174 = vadd.f32 %v140, %v173
    %v175 = vand.u32 %v62, 4294901760
    %v176 = vsub.f32 %v62, %v175
    %177 = vmatmul.f32.gmra.mxu0 %v176
    %v178 = vpop.f32.mrf.mxu0
    %v179 = vadd.f32 %v144, %v178
    %180 = vdwg.mxu0
    %181 = vmatpush.msra.mxu0 0.0
    %182 = vmatpush.msra.mxu0 0.0
    %183 = vmatpush.msra.mxu0 0.0
    %184 = vmatpush.msra.mxu0 0.0
    %185 = vmatpush.msra.mxu0 0.0
    %186 = vmatpush.msra.mxu0 0.0
    %187 = vmatpush.msra.mxu0 0.0
    %188 = vmatpush.msra.mxu0 0.0
    %189 = vmatpush.msra.mxu0 0.0
    %190 = vmatpush.msra.mxu0 0.0
    %191 = vmatpush.msra.mxu0 0.0
    %192 = vmatpush.msra.mxu0 0.0
    %v193 = vand.u32 %v52, 4294901760
    %194 = vmatpush.msra.mxu0 %v193
    %v195 = vand.u32 %v51, 4294901760
    %196 = vmatpush.msra.mxu0 %v195
    %v197 = vand.u32 %v50, 4294901760
    %198 = vmatpush.msra.mxu0 %v197
    %v199 = vand.u32 %v49, 4294901760
    %200 = vmatpush.msra.mxu0 %v199
    %v201 = vand.u32 %v59, 4294901760
    %v202 = vsub.f32 %v59, %v201
    %v203 = vand.u32 %v202, 4294901760
    %204 = vmatmul.f32.gmra.mxu0 %v203
    %v205 = vpop.f32.mrf.mxu0
    %v206 = vadd.f32 %v174, %v205
    %v207 = vand.u32 %v62, 4294901760
    %v208 = vsub.f32 %v62, %v207
    %v209 = vand.u32 %v208, 4294901760
    %210 = vmatmul.f32.gmra.mxu0 %v209
    %v211 = vpop.f32.mrf.mxu0
    %v212 = vadd.f32 %v179, %v211
    %213 = vdwg.mxu0
    %214 = vmatpush.msra.mxu0 0.0
    %215 = vmatpush.msra.mxu0 0.0
    %216 = vmatpush.msra.mxu0 0.0
    %217 = vmatpush.msra.mxu0 0.0
    %218 = vmatpush.msra.mxu0 0.0
    %219 = vmatpush.msra.mxu0 0.0
    %220 = vmatpush.msra.mxu0 0.0
    %221 = vmatpush.msra.mxu0 0.0
    %222 = vmatpush.msra.mxu0 0.0
    %223 = vmatpush.msra.mxu0 0.0
    %224 = vmatpush.msra.mxu0 0.0
    %225 = vmatpush.msra.mxu0 0.0
    %v226 = vand.u32 %v52, 4294901760
    %v227 = vsub.f32 %v52, %v226
    %v228 = vand.u32 %v227, 4294901760
    %229 = vmatpush.msra.mxu0 %v228
    %v230 = vand.u32 %v51, 4294901760
    %v231 = vsub.f32 %v51, %v230
    %v232 = vand.u32 %v231, 4294901760
    %233 = vmatpush.msra.mxu0 %v232
    %v234 = vand.u32 %v50, 4294901760
    %v235 = vsub.f32 %v50, %v234
    %v236 = vand.u32 %v235, 4294901760
    %237 = vmatpush.msra.mxu0 %v236
    %v238 = vand.u32 %v49, 4294901760
    %v239 = vsub.f32 %v49, %v238
    %v240 = vand.u32 %v239, 4294901760
    %241 = vmatpush.msra.mxu0 %v240
    %v242 = vand.u32 %v59, 4294901760
    %243 = vmatmul.f32.gmra.mxu0 %v242
    %v244 = vpop.f32.mrf.mxu0
    %v245 = vadd.f32 %v206, %v244
    %v246 = vand.u32 %v62, 4294901760
    %247 = vmatmul.f32.gmra.mxu0 %v246
    %v248 = vpop.f32.mrf.mxu0
    %v249 = vadd.f32 %v212, %v248
    %250 = vdwg.mxu0
    %251 = vmatpush.msra.mxu0 0.0
    %252 = vmatpush.msra.mxu0 0.0
    %253 = vmatpush.msra.mxu0 0.0
    %254 = vmatpush.msra.mxu0 0.0
    %255 = vmatpush.msra.mxu0 0.0
    %256 = vmatpush.msra.mxu0 0.0
    %257 = vmatpush.msra.mxu0 0.0
    %258 = vmatpush.msra.mxu0 0.0
    %259 = vmatpush.msra.mxu0 0.0
    %260 = vmatpush.msra.mxu0 0.0
    %261 = vmatpush.msra.mxu0 0.0
    %262 = vmatpush.msra.mxu0 0.0
    %v263 = vand.u32 %v52, 4294901760
    %264 = vmatpush.msra.mxu0 %v263
    %v265 = vand.u32 %v51, 4294901760
    %266 = vmatpush.msra.mxu0 %v265
    %v267 = vand.u32 %v50, 4294901760
    %268 = vmatpush.msra.mxu0 %v267
    %v269 = vand.u32 %v49, 4294901760
    %270 = vmatpush.msra.mxu0 %v269
    %v271 = vand.u32 %v59, 4294901760
    %272 = vmatmul.f32.gmra.mxu0 %v271
    %v273 = vpop.f32.mrf.mxu0
    %v274 = vadd.f32 %v245, %v273
    %v275 = vand.u32 %v62, 4294901760
    %276 = vmatmul.f32.gmra.mxu0 %v275
    %v277 = vpop.f32.mrf.mxu0
    %v278 = vadd.f32 %v249, %v277
    %279 = vdwg.mxu0
    %vm280 = vcmask 785408
    %281 = vst.msk [vmem:[#allocation7] sm:$0xff] %vm280, %v274
    %282 = vst.msk [vmem:[#allocation7 + $0x8] sm:$0xff] %vm280, %v278
    // Predicated region
    $region22: #{tpu_custom_call.1} parent=1 // pred_check
      _
    $region23: #{tpu_custom_call.1} parent=1 // pred_check_branch
      %284 = sbr.rel (0) target = $region25
    $region24: #{tpu_custom_call.1} parent=1 // pred_region
      %286 = vsyncadd [#allocation4], 0
      %s287 = sshll.u32 [#allocation7], 4
      %s288 = int_to_ptr.vmem [resolvable:$true] %s287
      %s289 = sshll.u32 %s3, 4
      %s290 = int_to_ptr.hbm [resolvable:$true] %s289
      %295 = dma.vmem_to_hbm [thread:$0]  %s288, 256, %s290, [#allocation4], 128, 128, 8
    $region25: #{tpu_custom_call.1} parent=1 // pred_fallthru
      _
    // Predicated region
    $region26: #{tpu_custom_call.1} parent=1 // pred_check
      _
    $region27: #{tpu_custom_call.1} parent=1 // pred_check_branch
      %297 = sbr.rel (0) target = $region29
    $region28: #{tpu_custom_call.1} parent=1 // pred_region
      %299 = dma.done [#allocation4], 256
    $region29: #{tpu_custom_call.1} parent=1 // pred_fallthru
      _
    %300 = vsyncpa [#allocation3], 1
    %301 = vsyncpa [#allocation6], 1
    %302 = vsyncpa [#allocation4], 1

</llo_original>
